<compile_context>
chip_gen: v7x
topology: tpu7x:2x2x1
jax: 0.10.0
libtpu: 0.0.40
codegen_flags: <defaults>
</compile_context>

<pallas_src>
import jax
import jax.numpy as jnp
from jax.experimental import pallas as pl
from jax.experimental.pallas import tpu as pltpu

D_IN, D_H1, D_H2, D_OUT = 7 * 3, 256, 64, 2 * 6


def _round_up(n, m):
    return ((n + m - 1) // m) * m


def mlp_kernel(x_ref, w1_ref, b1_ref, w2_ref, b2_ref, w3_ref, b3_ref, o_ref):
    # fc1 -> (dropout = identity in eval) -> relu.  bf16 MXU operands, f32
    # accumulate; bias+ReLU fused and result cast straight to bf16 so only a
    # bf16 (TM, 256) intermediate stays live between mm1 and mm2.
    h1 = jnp.dot(x_ref[...].astype(jnp.bfloat16), w1_ref[...],
                 preferred_element_type=jnp.float32)
    h1 = jnp.maximum(h1 + b1_ref[...], 0.0).astype(jnp.bfloat16)
    # fc2 -> (dropout = identity) -> relu
    h2 = jnp.dot(h1, w2_ref[...], preferred_element_type=jnp.float32)
    h2 = jnp.maximum(h2 + b2_ref[...], 0.0).astype(jnp.bfloat16)
    # fc3 (bias add in f32)
    o_ref[...] = jnp.dot(h2, w3_ref[...],
                         preferred_element_type=jnp.float32) + b3_ref[...]
    # TODO(synk): nn.Dropout(p=0.1) is implemented as identity (eval-mode
    # semantics); training-mode masking would use pltpu.prng_seed/prng_random_bits.


def _choose_tiling(B, max_tm):
    """Pick (TM, padded_B, n_steps).

    - pad B only to a multiple of 8 (sublane tiling), never to a full TM;
    - aim for >= 2 grid steps when there is enough work so the "parallel"
      grid axis can shard across v7x's 2 TensorCores;
    - TM = round_up(cdiv(Bp, n_steps), 8) keeps total padding waste to
      <= ~8 rows per step even for unlucky batch sizes.
    """
    max_tm = max(8, _round_up(max_tm, 8))
    bp8 = _round_up(B, 8)
    min_steps = 2 if bp8 >= 16 else 1
    n_steps = max(min_steps, pl.cdiv(bp8, max_tm))
    tm = _round_up(pl.cdiv(bp8, n_steps), 8)
    n_steps = pl.cdiv(bp8, tm)
    return tm, n_steps * tm, n_steps


def mlp_forward(x, params, *, max_tm=4096, min_pallas_batch=512):
    """x: (B, 7, 3) float32 -> (B, 2, 6) float32.

    max_tm=4096 keeps the per-step working set (double-buffered x/out blocks
    + bf16 intermediates + ~50 KB resident weights, ~7 MiB total) well inside
    the scoped-VMEM budget on v5e/v6e/v7x while amortizing per-step overhead.
    """
    w1, b1, w2, b2, w3, b3 = params
    B = x.shape[0]
    x2d = x.reshape(B, D_IN)
    bf = jnp.bfloat16

    if B < min_pallas_batch:
        # Tiny batches are pure launch/pipeline overhead for a custom kernel;
        # let XLA fuse the three small matmuls (same bf16-operand/f32-acc math).
        h = jnp.maximum(jnp.dot(x2d.astype(bf), w1.astype(bf),
                                preferred_element_type=jnp.float32) + b1, 0.0)
        h = jnp.maximum(jnp.dot(h.astype(bf), w2.astype(bf),
                                preferred_element_type=jnp.float32) + b2, 0.0)
        out2d = jnp.dot(h.astype(bf), w3.astype(bf),
                        preferred_element_type=jnp.float32) + b3
        return out2d.reshape(B, 2, 6)

    # bf16 matmul operands (weights are tiny, cast is negligible); biases f32.
    w1b, w2b, w3b = w1.astype(bf), w2.astype(bf), w3.astype(bf)

    TM, Bp, n_steps = _choose_tiling(B, max_tm)
    if Bp != B:
        x2d = jnp.pad(x2d, ((0, Bp - B), (0, 0)))

    flops = 2 * Bp * (D_IN * D_H1 + D_H1 * D_H2 + D_H2 * D_OUT)
    bytes_accessed = (
        Bp * (D_IN + D_OUT) * 4                                   # x in, out
        + (D_IN * D_H1 + D_H1 * D_H2 + D_H2 * D_OUT) * 2          # bf16 weights
        + (D_H1 + D_H2 + D_OUT) * 4                               # f32 biases
    )

    # Weights/biases: constant index_map (DMA'd once, VMEM-resident for the
    # whole grid) and a single pipeline buffer (no pointless double-buffer).
    def resident(shape):
        return pl.BlockSpec(shape, lambda i: (0, 0),
                            pipeline_mode=pl.Buffered(1))

    out2d = pl.pallas_call(
        mlp_kernel,
        out_shape=jax.ShapeDtypeStruct((Bp, D_OUT), jnp.float32),
        grid=(n_steps,),
        in_specs=[
            pl.BlockSpec((TM, D_IN), lambda i: (i, 0)),
            resident((D_IN, D_H1)), resident((1, D_H1)),
            resident((D_H1, D_H2)), resident((1, D_H2)),
            resident((D_H2, D_OUT)), resident((1, D_OUT)),
        ],
        out_specs=pl.BlockSpec((TM, D_OUT), lambda i: (i, 0)),
        compiler_params=pltpu.CompilerParams(
            dimension_semantics=("parallel",),
            vmem_limit_bytes=32 * 1024 * 1024,
        ),
        cost_estimate=pl.CostEstimate(
            flops=flops, transcendentals=0, bytes_accessed=bytes_accessed),
    )(x2d, w1b, b1, w2b, b2, w3b, b3)

    return out2d[:B].reshape(B, 2, 6)


def init_params(key):
    """Deterministic init mimicking PyTorch nn.Linear (uniform +/- 1/sqrt(fan_in))."""
    def linear(k, fan_in, fan_out):
        kw, kb = jax.random.split(k)
        bound = 1.0 / jnp.sqrt(fan_in)
        w = jax.random.uniform(kw, (fan_in, fan_out), jnp.float32, -bound, bound)
        b = jax.random.uniform(kb, (1, fan_out), jnp.float32, -bound, bound)
        return w, b

    k1, k2, k3 = jax.random.split(key, 3)
    w1, b1 = linear(k1, D_IN, D_H1)
    w2, b2 = linear(k2, D_H1, D_H2)
    w3, b3 = linear(k3, D_H2, D_OUT)
    return (w1, b1, w2, b2, w3, b3)


def _reference(x, params):
    """Plain-JAX reference with the same bf16-operand / f32-accumulate math."""
    w1, b1, w2, b2, w3, b3 = params
    bf = jnp.bfloat16
    x2d = x.reshape(x.shape[0], D_IN)
    h = jnp.maximum(jnp.dot(x2d.astype(bf), w1.astype(bf),
                            preferred_element_type=jnp.float32) + b1, 0.0)
    h = jnp.maximum(jnp.dot(h.astype(bf), w2.astype(bf),
                            preferred_element_type=jnp.float32) + b2, 0.0)
    out = jnp.dot(h.astype(bf), w3.astype(bf),
                  preferred_element_type=jnp.float32) + b3
    return out.reshape(-1, 2, 6)


if __name__ == "__main__":
    key = jax.random.PRNGKey(0)
    kx, kp = jax.random.split(key)
    params = init_params(kp)

    # 1) Small batch forced through the Pallas kernel (single grid step).
    B = 8
    x = jax.random.normal(kx, (B, 7, 3), jnp.float32)
    out = mlp_forward(x, params, min_pallas_batch=0)
    jax.block_until_ready(out)
    assert out.shape == (B, 2, 6), out.shape
    assert jnp.allclose(out, _reference(x, params), atol=1e-3, rtol=1e-3), \
        "mismatch vs reference (single-step)"

    # 2) Non-multiple-of-tile batch exercising the multi-step grid + padding
    #    path (tiny max_tm keeps shapes small: TM=16, 7 grid steps).
    B2 = 100
    x2 = jax.random.normal(kx, (B2, 7, 3), jnp.float32)
    out2 = mlp_forward(x2, params, max_tm=16, min_pallas_batch=0)
    jax.block_until_ready(out2)
    assert out2.shape == (B2, 2, 6), out2.shape
    assert jnp.allclose(out2, _reference(x2, params), atol=1e-3, rtol=1e-3), \
        "mismatch vs reference (multi-step)"

    # 3) Default path for tiny batches uses the plain-XLA fallback.
    out3 = mlp_forward(x, params)
    jax.block_until_ready(out3)
    assert jnp.allclose(out3, _reference(x, params), atol=1e-3, rtol=1e-3), \
        "mismatch vs reference (fallback)"

    print("KERNEL_OK")
</pallas_src>

<mosaic_0001>
module attributes {stable_mosaic.version = 11 : i64} {
  func.func @mlp_kernel(%arg0: i32, %arg1: memref<8x21xf32, #tpu.memory_space<vmem>>, %arg2: memref<21x256xbf16, #tpu.memory_space<vmem>>, %arg3: memref<1x256xf32, #tpu.memory_space<vmem>>, %arg4: memref<256x64xbf16, #tpu.memory_space<vmem>>, %arg5: memref<1x64xf32, #tpu.memory_space<vmem>>, %arg6: memref<64x12xbf16, #tpu.memory_space<vmem>>, %arg7: memref<1x12xf32, #tpu.memory_space<vmem>>, %arg8: memref<8x12xf32, #tpu.memory_space<vmem>>) attributes {dimension_semantics = [#tpu.dimension_semantics<parallel>], iteration_bounds = array<i64: 1>, scalar_prefetch = 0 : i64, scratch_operands = 0 : i64, tpu.core_type = #tpu.core_type<tc>, window_params = [{transform_indices = @transform_0, window_bounds = array<i64: 8, 21>}, {pipeline_mode = #tpu.pipeline_mode<synchronous>, transform_indices = @transform_1, window_bounds = array<i64: 21, 256>}, {pipeline_mode = #tpu.pipeline_mode<synchronous>, transform_indices = @transform_2, window_bounds = array<i64: 1, 256>}, {pipeline_mode = #tpu.pipeline_mode<synchronous>, transform_indices = @transform_3, window_bounds = array<i64: 256, 64>}, {pipeline_mode = #tpu.pipeline_mode<synchronous>, transform_indices = @transform_4, window_bounds = array<i64: 1, 64>}, {pipeline_mode = #tpu.pipeline_mode<synchronous>, transform_indices = @transform_5, window_bounds = array<i64: 64, 12>}, {pipeline_mode = #tpu.pipeline_mode<synchronous>, transform_indices = @transform_6, window_bounds = array<i64: 1, 12>}, {transform_indices = @transform_7, window_bounds = array<i64: 8, 12>}]} {
    %c0 = arith.constant 0 : index
    %c0_0 = arith.constant 0 : index
    %0 = vector.load %arg1[%c0, %c0_0] : memref<8x21xf32, #tpu.memory_space<vmem>>, vector<8x21xf32>
    %1 = arith.truncf %0 : vector<8x21xf32> to vector<8x21xbf16>
    %c0_1 = arith.constant 0 : index
    %c0_2 = arith.constant 0 : index
    %2 = vector.load %arg2[%c0_1, %c0_2] : memref<21x256xbf16, #tpu.memory_space<vmem>>, vector<21x256xbf16>
    %cst = arith.constant dense<0.000000e+00> : vector<8x256xf32>
    %3 = tpu.matmul %1, %2, %cst {dimension_numbers = #tpu.dot_dimension_numbers<[1], [0], [0], [1], [0, 0, 1, 1], [], []>} : vector<8x21xbf16>, vector<21x256xbf16>, vector<8x256xf32> -> vector<8x256xf32>
    %c0_3 = arith.constant 0 : index
    %c0_4 = arith.constant 0 : index
    %4 = vector.load %arg3[%c0_3, %c0_4] : memref<1x256xf32, #tpu.memory_space<vmem>>, vector<1x256xf32>
    %5 = vector.broadcast %4 : vector<1x256xf32> to vector<8x256xf32>
    %6 = arith.addf %3, %5 : vector<8x256xf32>
    %cst_5 = arith.constant 0.000000e+00 : f32
    %7 = vector.broadcast %cst_5 : f32 to vector<8x256xf32>
    %8 = arith.maximumf %6, %7 : vector<8x256xf32>
    %9 = arith.truncf %8 : vector<8x256xf32> to vector<8x256xbf16>
    %c0_6 = arith.constant 0 : index
    %c0_7 = arith.constant 0 : index
    %10 = vector.load %arg4[%c0_6, %c0_7] : memref<256x64xbf16, #tpu.memory_space<vmem>>, vector<256x64xbf16>
    %cst_8 = arith.constant dense<0.000000e+00> : vector<8x64xf32>
    %11 = tpu.matmul %9, %10, %cst_8 {dimension_numbers = #tpu.dot_dimension_numbers<[1], [0], [0], [1], [0, 0, 1, 1], [], []>} : vector<8x256xbf16>, vector<256x64xbf16>, vector<8x64xf32> -> vector<8x64xf32>
    %c0_9 = arith.constant 0 : index
    %c0_10 = arith.constant 0 : index
    %12 = vector.load %arg5[%c0_9, %c0_10] : memref<1x64xf32, #tpu.memory_space<vmem>>, vector<1x64xf32>
    %13 = vector.broadcast %12 : vector<1x64xf32> to vector<8x64xf32>
    %14 = arith.addf %11, %13 : vector<8x64xf32>
    %cst_11 = arith.constant 0.000000e+00 : f32
    %15 = vector.broadcast %cst_11 : f32 to vector<8x64xf32>
    %16 = arith.maximumf %14, %15 : vector<8x64xf32>
    %17 = arith.truncf %16 : vector<8x64xf32> to vector<8x64xbf16>
    %c0_12 = arith.constant 0 : index
    %c0_13 = arith.constant 0 : index
    %18 = vector.load %arg6[%c0_12, %c0_13] : memref<64x12xbf16, #tpu.memory_space<vmem>>, vector<64x12xbf16>
    %cst_14 = arith.constant dense<0.000000e+00> : vector<8x12xf32>
    %19 = tpu.matmul %17, %18, %cst_14 {dimension_numbers = #tpu.dot_dimension_numbers<[1], [0], [0], [1], [0, 0, 1, 1], [], []>} : vector<8x64xbf16>, vector<64x12xbf16>, vector<8x12xf32> -> vector<8x12xf32>
    %c0_15 = arith.constant 0 : index
    %c0_16 = arith.constant 0 : index
    %20 = vector.load %arg7[%c0_15, %c0_16] : memref<1x12xf32, #tpu.memory_space<vmem>>, vector<1x12xf32>
    %21 = vector.broadcast %20 : vector<1x12xf32> to vector<8x12xf32>
    %22 = arith.addf %19, %21 : vector<8x12xf32>
    %c0_17 = arith.constant 0 : index
    %c0_18 = arith.constant 0 : index
    %23 = vector.load %arg8[%c0_17, %c0_18] : memref<8x12xf32, #tpu.memory_space<vmem>>, vector<8x12xf32>
    tpu.vector_store %arg8[%c0_17, %c0_18], %22 {strides = array<i32>} : memref<8x12xf32, #tpu.memory_space<vmem>>, vector<8x12xf32>,
    return
  }
  func.func @transform_0(%arg0: i32) -> (i32, i32) {
    %c0_i32 = arith.constant 0 : i32
    %c0_i32_0 = arith.constant 0 : i32
    return %arg0, %c0_i32 : i32, i32
  }
  func.func @transform_1(%arg0: i32) -> (i32, i32) {
    %c0_i32 = arith.constant 0 : i32
    %c0_i32_0 = arith.constant 0 : i32
    %c0_i32_1 = arith.constant 0 : i32
    return %c0_i32, %c0_i32_0 : i32, i32
  }
  func.func @transform_2(%arg0: i32) -> (i32, i32) {
    %c0_i32 = arith.constant 0 : i32
    %c0_i32_0 = arith.constant 0 : i32
    %c0_i32_1 = arith.constant 0 : i32
    return %c0_i32, %c0_i32_0 : i32, i32
  }
  func.func @transform_3(%arg0: i32) -> (i32, i32) {
    %c0_i32 = arith.constant 0 : i32
    %c0_i32_0 = arith.constant 0 : i32
    %c0_i32_1 = arith.constant 0 : i32
    return %c0_i32, %c0_i32_0 : i32, i32
  }
  func.func @transform_4(%arg0: i32) -> (i32, i32) {
    %c0_i32 = arith.constant 0 : i32
    %c0_i32_0 = arith.constant 0 : i32
    %c0_i32_1 = arith.constant 0 : i32
    return %c0_i32, %c0_i32_0 : i32, i32
  }
  func.func @transform_5(%arg0: i32) -> (i32, i32) {
    %c0_i32 = arith.constant 0 : i32
    %c0_i32_0 = arith.constant 0 : i32
    %c0_i32_1 = arith.constant 0 : i32
    return %c0_i32, %c0_i32_0 : i32, i32
  }
  func.func @transform_6(%arg0: i32) -> (i32, i32) {
    %c0_i32 = arith.constant 0 : i32
    %c0_i32_0 = arith.constant 0 : i32
    %c0_i32_1 = arith.constant 0 : i32
    return %c0_i32, %c0_i32_0 : i32, i32
  }
  func.func @transform_7(%arg0: i32) -> (i32, i32) {
    %c0_i32 = arith.constant 0 : i32
    %c0_i32_0 = arith.constant 0 : i32
    return %arg0, %c0_i32 : i32, i32
  }
}

</mosaic_0001>

<llo_original>
// kernel: tpu_custom_call.1
$region0: #{tpu_custom_call.1}
  #allocation0 [shape = 'u32[]', space=smem, size = 0x4, offset = 0x4, fixed_abs, tag = 'smem constant byte address 0x4 - core index']
  #allocation1 [shape = 'u32[144,128]{1,0:T(1,128)}', space=vmem, size = 0x12000, scoped, tag = 'internal scratch']
  %s0 = inlined_call_operand.vmem [shape: f32[8,21], index: 0, kind: input, shape index: {}]
  %s1 = inlined_call_operand.vmem [shape: bf16[21,256], index: 1, kind: input, shape index: {}]
  %s2 = inlined_call_operand.vmem [shape: f32[1,256], index: 2, kind: input, shape index: {}]
  %s3 = inlined_call_operand.vmem [shape: bf16[256,64], index: 3, kind: input, shape index: {}]
  %s4 = inlined_call_operand.vmem [shape: f32[1,64], index: 4, kind: input, shape index: {}]
  %s5 = inlined_call_operand.vmem [shape: bf16[64,12], index: 5, kind: input, shape index: {}]
  %s6 = inlined_call_operand.vmem [shape: f32[1,12], index: 6, kind: input, shape index: {}]
  %s7 = inlined_call_operand.hbm [shape: f32[8,12], index: 7, kind: output, shape index: {}]
  %s8 = sld [smem:[#allocation0]]
  $region38: #{tpu_custom_call.1} parent=0
    _
  %s10 = ssub.s32 1, %s8
  %s11 = scalar_select 0, %s10, %s8
  $region1: #{tpu_custom_call.1} parent=0
    #allocation2 [shape = 'u8[4096]{0}', space=vmem, size = 0x1000, scoped, tag = 'output window, operand 0, single buffered']
    #allocation3 [shape = 's32[1]{0}', space=sflag, size = 0x4, scoped, tag = 'scoped memory for tpu_custom_call.1']
    %12 = vsyncpa [#allocation3], 0
    // Predicated region
    $region2: #{tpu_custom_call.1} parent=1 // pred_check
      _
    $region3: #{tpu_custom_call.1} parent=1 // pred_check_branch
      %14 = sbr.rel (0) target = $region5
    $region4: #{tpu_custom_call.1} parent=1 // pred_region
      _
    $region5: #{tpu_custom_call.1} parent=1 // pred_fallthru
      _
    // Predicated region
    $region6: #{tpu_custom_call.1} parent=1 // pred_check
      _
    $region7: #{tpu_custom_call.1} parent=1 // pred_check_branch
      %16 = sbr.rel (0) target = $region9
    $region8: #{tpu_custom_call.1} parent=1 // pred_region
      _
    $region9: #{tpu_custom_call.1} parent=1 // pred_fallthru
      _
    // Predicated region
    $region10: #{tpu_custom_call.1} parent=1 // pred_check
      _
    $region11: #{tpu_custom_call.1} parent=1 // pred_check_branch
      %18 = sbr.rel (0) target = $region13
    $region12: #{tpu_custom_call.1} parent=1 // pred_region
      _
    $region13: #{tpu_custom_call.1} parent=1 // pred_fallthru
      _
    // Predicated region
    $region14: #{tpu_custom_call.1} parent=1 // pred_check
      _
    $region15: #{tpu_custom_call.1} parent=1 // pred_check_branch
      %20 = sbr.rel (0) target = $region17
    $region16: #{tpu_custom_call.1} parent=1 // pred_region
      _
    $region17: #{tpu_custom_call.1} parent=1 // pred_fallthru
      _
    // Predicated region
    $region18: #{tpu_custom_call.1} parent=1 // pred_check
      _
    $region19: #{tpu_custom_call.1} parent=1 // pred_check_branch
      %22 = sbr.rel (0) target = $region21
    $region20: #{tpu_custom_call.1} parent=1 // pred_region
      _
    $region21: #{tpu_custom_call.1} parent=1 // pred_fallthru
      _
    // Predicated region
    $region22: #{tpu_custom_call.1} parent=1 // pred_check
      _
    $region23: #{tpu_custom_call.1} parent=1 // pred_check_branch
      %24 = sbr.rel (0) target = $region25
    $region24: #{tpu_custom_call.1} parent=1 // pred_region
      _
    $region25: #{tpu_custom_call.1} parent=1 // pred_fallthru
      _
    // Predicated region
    $region26: #{tpu_custom_call.1} parent=1 // pred_check
      _
    $region27: #{tpu_custom_call.1} parent=1 // pred_check_branch
      %26 = sbr.rel (0) target = $region29
    $region28: #{tpu_custom_call.1} parent=1 // pred_region
      _
    $region29: #{tpu_custom_call.1} parent=1 // pred_fallthru
      _
    %v28 = vld [vmem:[%s0] sm:$0xff]
    %v29 = vpack.c.bf16 %v28, %v28
    %v30 = vld [vmem:[%s1] sm:$0xff]
    %v31 = vld [vmem:[%s1 + $0x8] sm:$0xff]
    %v32 = vld [vmem:[%s1 + $0x10] sm:$0x77]
    %v33 = vld [vmem:[%s2] sm:$0x3]
    %v35 = vlaneseq
    %v36 = vshrl.u32 %v35, 7
    %v37 = vsub.s32 0, %v36
    %v38 = vrot.slane %v33, %v37
    %v39 = vlaneseq
    %v40 = vshrl.u32 %v39, 7
    %v41 = vsub.s32 1, %v40
    %v42 = vrot.slane %v33, %v41
    %v48 = vunpack.c.l.b16 %v30
    %v49 = vunpack.c.h.b16 %v30
    %v50 = vunpack.c.l.b16 %v31
    %v51 = vunpack.c.h.b16 %v31
    %v52 = vunpack.c.l.b16 %v32
    %v53 = vunpack.c.h.b16 %v32
    %v54 = vpack.c.b16 %v50, %v48
    %v55 = vpack.c.b16 %v51, %v49
    %v56 = vpack.c.b16 %v52, %v52
    %v57 = vpack.c.b16 %v53, %v53
    %vm60 = vcmask 171008
    %v62 = vsel %vm60, %v29, 0
    %vm64 = vcmask 1041408
    %vm65 = vcmask 1042432
    %v66 = vsel %vm64, 4294967295, 65535
    %v67 = vsel %vm65, %v66, 0
    %v69 = vand.u32 %v56, %v67
    %v72 = vand.u32 %v57, %v67
    %74 = vmatprep.subr.bf16.mxu0 %v55
    %75 = vmatpush1.bf16.msra.mxu0 %v54
    %76 = vmatprep.subr.bf16.mxu0 %v72
    %77 = vmatpush1.bf16.msra.mxu0 %v69
    %78 = vmatprep.subr.bf16.mxu0 0
    %79 = vmatpush1.bf16.msra.mxu0 0
    %80 = vmatprep.subr.bf16.mxu0 0
    %81 = vmatpush1.bf16.msra.mxu0 0
    %82 = vmatprep.subr.bf16.mxu0 0
    %83 = vmatpush1.bf16.msra.mxu0 0
    %84 = vmatprep.subr.bf16.mxu0 0
    %85 = vmatpush1.bf16.msra.mxu0 0
    %86 = vmatprep.subr.bf16.mxu0 0
    %87 = vmatpush1.bf16.msra.mxu0 0
    %88 = vmatprep.subr.bf16.mxu0 0
    %89 = vmatpush1.bf16.msra.mxu0 0
    %90 = vmatprep.subr.bf16.mxu0 0
    %91 = vmatpush1.bf16.msra.mxu0 0
    %92 = vmatprep.subr.bf16.mxu0 0
    %93 = vmatpush1.bf16.msra.mxu0 0
    %94 = vmatprep.subr.bf16.mxu0 0
    %95 = vmatpush1.bf16.msra.mxu0 0
    %96 = vmatprep.subr.bf16.mxu0 0
    %97 = vmatpush1.bf16.msra.mxu0 0
    %98 = vmatprep.subr.bf16.mxu0 0
    %99 = vmatpush1.bf16.msra.mxu0 0
    %100 = vmatprep.subr.bf16.mxu0 0
    %101 = vmatpush1.bf16.msra.mxu0 0
    %102 = vmatprep.subr.bf16.mxu0 0
    %103 = vmatpush1.bf16.msra.mxu0 0
    %104 = vmatprep.subr.bf16.mxu0 0
    %105 = vmatpush1.bf16.msra.mxu0 0
    %106 = vmatprep.mubr.bf16.mxu0 0
    %107 = vmatmul.mubr.bf16.gmra.mrb[0].mxu0 %v62
    %v108 = vpop.f32.mrb[0].mxu0
    %v109 = vadd.f32 %v38, %v108
    %v110 = vpop.f32.mrb[0].mxu0
    %v111 = vadd.f32 %v42, %v110
    %v112 = vpop.f32.mrb[0].mxu0
    %v113 = vpop.f32.mrb[0].mxu0
    %114 = vdwg.mxu0
    %v115 = vmax.f32 %v109, 0.0
    %v116 = vmax.f32 %v111, 0.0
    %v117 = vpack.c.bf16 %v115, %v115
    %v118 = vpack.c.bf16 %v116, %v116
    %v119 = vld [vmem:[%s3] sm:$0xf]
    %v120 = vld [vmem:[%s3 + $0x4] sm:$0xf]
    %v121 = vld [vmem:[%s3 + $0x8] sm:$0xf]
    %v122 = vld [vmem:[%s3 + $0xc] sm:$0xf]
    %v123 = vld [vmem:[%s3 + $0x10] sm:$0xf]
    %v124 = vld [vmem:[%s3 + $0x14] sm:$0xf]
    %v125 = vld [vmem:[%s3 + $0x18] sm:$0xf]
    %v126 = vld [vmem:[%s3 + $0x1c] sm:$0xf]
    %v127 = vld [vmem:[%s3 + $0x20] sm:$0xf]
    %v128 = vld [vmem:[%s3 + $0x24] sm:$0xf]
    %v129 = vld [vmem:[%s3 + $0x28] sm:$0xf]
    %v130 = vld [vmem:[%s3 + $0x2c] sm:$0xf]
    %v131 = vld [vmem:[%s3 + $0x30] sm:$0xf]
    %v132 = vld [vmem:[%s3 + $0x34] sm:$0xf]
    %v133 = vld [vmem:[%s3 + $0x38] sm:$0xf]
    %v134 = vld [vmem:[%s3 + $0x3c] sm:$0xf]
    %v135 = vld [vmem:[%s3 + $0x40] sm:$0xf]
    %v136 = vld [vmem:[%s3 + $0x44] sm:$0xf]
    %v137 = vld [vmem:[%s3 + $0x48] sm:$0xf]
    %v138 = vld [vmem:[%s3 + $0x4c] sm:$0xf]
    %v139 = vld [vmem:[%s3 + $0x50] sm:$0xf]
    %v140 = vld [vmem:[%s3 + $0x54] sm:$0xf]
    %v141 = vld [vmem:[%s3 + $0x58] sm:$0xf]
    %v142 = vld [vmem:[%s3 + $0x5c] sm:$0xf]
    %v143 = vld [vmem:[%s3 + $0x60] sm:$0xf]
    %v144 = vld [vmem:[%s3 + $0x64] sm:$0xf]
    %v145 = vld [vmem:[%s3 + $0x68] sm:$0xf]
    %v146 = vld [vmem:[%s3 + $0x6c] sm:$0xf]
    %v147 = vld [vmem:[%s3 + $0x70] sm:$0xf]
    %v148 = vld [vmem:[%s3 + $0x74] sm:$0xf]
    %v149 = vld [vmem:[%s3 + $0x78] sm:$0xf]
    %v150 = vld [vmem:[%s3 + $0x7c] sm:$0xf]
    %v151 = vld [vmem:[%s4] sm:$0x1]
    %v153 = vlaneseq
    %v154 = vshrl.u32 %v153, 7
    %v155 = vsub.s32 0, %v154
    %v156 = vrot.slane %v151, %v155
    %v190 = vunpack.c.l.b16 %v119
    %v191 = vunpack.c.l.b16 %v120
    %v192 = vunpack.c.l.b16 %v121
    %v193 = vunpack.c.l.b16 %v122
    %v194 = vunpack.c.l.b16 %v123
    %v195 = vunpack.c.l.b16 %v124
    %v196 = vunpack.c.l.b16 %v125
    %v197 = vunpack.c.l.b16 %v126
    %v198 = vunpack.c.l.b16 %v127
    %v199 = vunpack.c.l.b16 %v128
    %v200 = vunpack.c.l.b16 %v129
    %v201 = vunpack.c.l.b16 %v130
    %v202 = vunpack.c.l.b16 %v131
    %v203 = vunpack.c.l.b16 %v132
    %v204 = vunpack.c.l.b16 %v133
    %v205 = vunpack.c.l.b16 %v134
    %v206 = vunpack.c.l.b16 %v135
    %v207 = vunpack.c.l.b16 %v136
    %v208 = vunpack.c.l.b16 %v137
    %v209 = vunpack.c.l.b16 %v138
    %v210 = vunpack.c.l.b16 %v139
    %v211 = vunpack.c.l.b16 %v140
    %v212 = vunpack.c.l.b16 %v141
    %v213 = vunpack.c.l.b16 %v142
    %v214 = vunpack.c.l.b16 %v143
    %v215 = vunpack.c.l.b16 %v144
    %v216 = vunpack.c.l.b16 %v145
    %v217 = vunpack.c.l.b16 %v146
    %v218 = vunpack.c.l.b16 %v147
    %v219 = vunpack.c.l.b16 %v148
    %v220 = vunpack.c.l.b16 %v149
    %v221 = vunpack.c.l.b16 %v150
    %v222 = vpack.c.b16 %v191, %v190
    %v223 = vpack.c.b16 %v193, %v192
    %v224 = vpack.c.b16 %v195, %v194
    %v225 = vpack.c.b16 %v197, %v196
    %v226 = vpack.c.b16 %v199, %v198
    %v227 = vpack.c.b16 %v201, %v200
    %v228 = vpack.c.b16 %v203, %v202
    %v229 = vpack.c.b16 %v205, %v204
    %v230 = vpack.c.b16 %v207, %v206
    %v231 = vpack.c.b16 %v209, %v208
    %v232 = vpack.c.b16 %v211, %v210
    %v233 = vpack.c.b16 %v213, %v212
    %v234 = vpack.c.b16 %v215, %v214
    %v235 = vpack.c.b16 %v217, %v216
    %v236 = vpack.c.b16 %v219, %v218
    %v237 = vpack.c.b16 %v221, %v220
    %254 = vmatprep.subr.bf16.mxu0 0
    %255 = vmatpush1.bf16.msra.mxu0 %v222
    %256 = vmatprep.subr.bf16.mxu0 0
    %257 = vmatpush1.bf16.msra.mxu0 %v223
    %258 = vmatprep.subr.bf16.mxu0 0
    %259 = vmatpush1.bf16.msra.mxu0 %v224
    %260 = vmatprep.subr.bf16.mxu0 0
    %261 = vmatpush1.bf16.msra.mxu0 %v225
    %262 = vmatprep.subr.bf16.mxu0 0
    %263 = vmatpush1.bf16.msra.mxu0 %v226
    %264 = vmatprep.subr.bf16.mxu0 0
    %265 = vmatpush1.bf16.msra.mxu0 %v227
    %266 = vmatprep.subr.bf16.mxu0 0
    %267 = vmatpush1.bf16.msra.mxu0 %v228
    %268 = vmatprep.subr.bf16.mxu0 0
    %269 = vmatpush1.bf16.msra.mxu0 %v229
    %270 = vmatprep.subr.bf16.mxu0 0
    %271 = vmatpush1.bf16.msra.mxu0 %v230
    %272 = vmatprep.subr.bf16.mxu0 0
    %273 = vmatpush1.bf16.msra.mxu0 %v231
    %274 = vmatprep.subr.bf16.mxu0 0
    %275 = vmatpush1.bf16.msra.mxu0 %v232
    %276 = vmatprep.subr.bf16.mxu0 0
    %277 = vmatpush1.bf16.msra.mxu0 %v233
    %278 = vmatprep.subr.bf16.mxu0 0
    %279 = vmatpush1.bf16.msra.mxu0 %v234
    %280 = vmatprep.subr.bf16.mxu0 0
    %281 = vmatpush1.bf16.msra.mxu0 %v235
    %282 = vmatprep.subr.bf16.mxu0 0
    %283 = vmatpush1.bf16.msra.mxu0 %v236
    %284 = vmatprep.subr.bf16.mxu0 0
    %285 = vmatpush1.bf16.msra.mxu0 %v237
    %286 = vmatprep.mubr.bf16.mxu0 %v118
    %287 = vmatmul.mubr.bf16.gmra.mrb[0].mxu0 %v117
    %v288 = vpop.f32.mrb[0].mxu0
    %v289 = vadd.f32 %v156, %v288
    %v290 = vpop.f32.mrb[0].mxu0
    %v291 = vpop.f32.mrb[0].mxu0
    %v292 = vpop.f32.mrb[0].mxu0
    %293 = vdwg.mxu0
    %v294 = vmax.f32 %v289, 0.0
    %v295 = vpack.c.bf16 %v294, %v294
    %v296 = vld [vmem:[%s5] sm:$0xf]
    %v297 = vld [vmem:[%s5 + $0x4] sm:$0xf]
    %v298 = vld [vmem:[%s5 + $0x8] sm:$0xf]
    %v299 = vld [vmem:[%s5 + $0xc] sm:$0xf]
    %v300 = vld [vmem:[%s5 + $0x10] sm:$0xf]
    %v301 = vld [vmem:[%s5 + $0x14] sm:$0xf]
    %v302 = vld [vmem:[%s5 + $0x18] sm:$0xf]
    %v303 = vld [vmem:[%s5 + $0x1c] sm:$0xf]
    %v304 = vld [vmem:[%s6] sm:$0x1]
    %v306 = vlaneseq
    %v307 = vshrl.u32 %v306, 7
    %v308 = vsub.s32 0, %v307
    %v309 = vrot.slane %v304, %v308
    %v319 = vunpack.c.l.b16 %v296
    %v320 = vunpack.c.l.b16 %v297
    %v321 = vunpack.c.l.b16 %v298
    %v322 = vunpack.c.l.b16 %v299
    %v323 = vunpack.c.l.b16 %v300
    %v324 = vunpack.c.l.b16 %v301
    %v325 = vunpack.c.l.b16 %v302
    %v326 = vunpack.c.l.b16 %v303
    %v327 = vpack.c.b16 %v320, %v319
    %v328 = vpack.c.b16 %v322, %v321
    %v329 = vpack.c.b16 %v324, %v323
    %v330 = vpack.c.b16 %v326, %v325
    %vm335 = vcmask 523264
    %v337 = vsel %vm335, %v295, 0
    %339 = vmatprep.subr.bf16.mxu0 0
    %340 = vmatpush1.bf16.msra.mxu0 %v327
    %341 = vmatprep.subr.bf16.mxu0 0
    %342 = vmatpush1.bf16.msra.mxu0 %v328
    %343 = vmatprep.subr.bf16.mxu0 0
    %344 = vmatpush1.bf16.msra.mxu0 %v329
    %345 = vmatprep.subr.bf16.mxu0 0
    %346 = vmatpush1.bf16.msra.mxu0 %v330
    %347 = vmatprep.subr.bf16.mxu0 0
    %348 = vmatpush1.bf16.msra.mxu0 0
    %349 = vmatprep.subr.bf16.mxu0 0
    %350 = vmatpush1.bf16.msra.mxu0 0
    %351 = vmatprep.subr.bf16.mxu0 0
    %352 = vmatpush1.bf16.msra.mxu0 0
    %353 = vmatprep.subr.bf16.mxu0 0
    %354 = vmatpush1.bf16.msra.mxu0 0
    %355 = vmatprep.subr.bf16.mxu0 0
    %356 = vmatpush1.bf16.msra.mxu0 0
    %357 = vmatprep.subr.bf16.mxu0 0
    %358 = vmatpush1.bf16.msra.mxu0 0
    %359 = vmatprep.subr.bf16.mxu0 0
    %360 = vmatpush1.bf16.msra.mxu0 0
    %361 = vmatprep.subr.bf16.mxu0 0
    %362 = vmatpush1.bf16.msra.mxu0 0
    %363 = vmatprep.subr.bf16.mxu0 0
    %364 = vmatpush1.bf16.msra.mxu0 0
    %365 = vmatprep.subr.bf16.mxu0 0
    %366 = vmatpush1.bf16.msra.mxu0 0
    %367 = vmatprep.subr.bf16.mxu0 0
    %368 = vmatpush1.bf16.msra.mxu0 0
    %369 = vmatprep.subr.bf16.mxu0 0
    %370 = vmatpush1.bf16.msra.mxu0 0
    %371 = vmatprep.mubr.bf16.mxu0 0
    %372 = vmatmul.mubr.bf16.gmra.mrb[0].mxu0 %v337
    %v373 = vpop.f32.mrb[0].mxu0
    %v374 = vadd.f32 %v309, %v373
    %v375 = vpop.f32.mrb[0].mxu0
    %v376 = vpop.f32.mrb[0].mxu0
    %v377 = vpop.f32.mrb[0].mxu0
    %378 = vdwg.mxu0
    %vm379 = vcmask 97280
    %380 = vst.msk [vmem:[#allocation2] sm:$0xff] %vm379, %v374
    // Predicated region
    $region30: #{tpu_custom_call.1} parent=1 // pred_check
      _
    $region31: #{tpu_custom_call.1} parent=1 // pred_check_branch
      %382 = sbr.rel (0) target = $region33
    $region32: #{tpu_custom_call.1} parent=1 // pred_region
      %s384 = ssub.s32 128, 128
      %385 = vsyncadd [#allocation3], %s384
      %s387 = sshll.u32 [#allocation2], 4
      %s388 = int_to_ptr.vmem [resolvable:$true] %s387
      %390 = dma.vmem_to_hbm [thread:$0]  %s388, 128, %s7, [#allocation3]
    $region33: #{tpu_custom_call.1} parent=1 // pred_fallthru
      _
    // Predicated region
    $region34: #{tpu_custom_call.1} parent=1 // pred_check
      _
    $region35: #{tpu_custom_call.1} parent=1 // pred_check_branch
      %392 = sbr.rel (0) target = $region37
    $region36: #{tpu_custom_call.1} parent=1 // pred_region
      %393 = dma.done [#allocation3], 128
    $region37: #{tpu_custom_call.1} parent=1 // pred_fallthru
      _
    %394 = vsyncpa [#allocation3], 1

</llo_original>
